<compile_context>
chip_gen: v5e
topology: v5e:2x2
jax: 0.10.0
libtpu: 0.0.40
codegen_flags: <defaults>
</compile_context>

<pallas_src>
import jax
import jax.numpy as jnp
from jax.experimental import pallas as pl
from jax.experimental.pallas import tpu as pltpu

stage_out_channel = [32] + [64] + [128] * 2 + [256] * 2 + [512] * 6 + [1024] * 2
BN_EPS = 1e-5


def _round_up(x, m):
    return (x + m - 1) // m * m


def _pick_tile(dim, candidates):
    for c in candidates:
        if dim % c == 0:
            return c
    return None


# ---------------------------------------------------------------------------
# Fused matmul kernels: MXU matmul + (BN | BN+residual+PReLU) epilogue
# ---------------------------------------------------------------------------

def _epi_bn(acc, s_ref, t_ref):
    return acc * s_ref[...] + t_ref[...]


def _epi_res_prelu(acc, s_ref, t_ref, r_ref, b1_ref, al_ref, b2_ref):
    # residual + BN(conv)  ->  +b1  ->  PReLU  ->  +b2
    y = r_ref[...] + acc * s_ref[...] + t_ref[...]
    v = y + b1_ref[...]
    return jnp.where(v > 0, v, al_ref[...] * v) + b2_ref[...]


def _mm_bn_kernel_1k(a_ref, b_ref, s_ref, t_ref, o_ref):
    acc = jnp.dot(a_ref[...], b_ref[...], preferred_element_type=jnp.float32)
    o_ref[...] = _epi_bn(acc, s_ref, t_ref).astype(o_ref.dtype)


def _mm_bn_kernel_nk(a_ref, b_ref, s_ref, t_ref, o_ref, acc_ref):
    @pl.when(pl.program_id(2) == 0)
    def _():
        acc_ref[...] = jnp.zeros_like(acc_ref)

    acc_ref[...] += jnp.dot(a_ref[...], b_ref[...],
                            preferred_element_type=jnp.float32)

    @pl.when(pl.program_id(2) == pl.num_programs(2) - 1)
    def _():
        o_ref[...] = _epi_bn(acc_ref[...], s_ref, t_ref).astype(o_ref.dtype)


def _mm_res_prelu_kernel_1k(a_ref, b_ref, s_ref, t_ref, r_ref,
                            b1_ref, al_ref, b2_ref, o_ref):
    acc = jnp.dot(a_ref[...], b_ref[...], preferred_element_type=jnp.float32)
    o_ref[...] = _epi_res_prelu(acc, s_ref, t_ref, r_ref,
                                b1_ref, al_ref, b2_ref).astype(o_ref.dtype)


def _mm_res_prelu_kernel_nk(a_ref, b_ref, s_ref, t_ref, r_ref,
                            b1_ref, al_ref, b2_ref, o_ref, acc_ref):
    @pl.when(pl.program_id(2) == 0)
    def _():
        acc_ref[...] = jnp.zeros_like(acc_ref)

    acc_ref[...] += jnp.dot(a_ref[...], b_ref[...],
                            preferred_element_type=jnp.float32)

    @pl.when(pl.program_id(2) == pl.num_programs(2) - 1)
    def _():
        o_ref[...] = _epi_res_prelu(acc_ref[...], s_ref, t_ref, r_ref,
                                    b1_ref, al_ref, b2_ref).astype(o_ref.dtype)


def fused_matmul(a, b, scale, shift, residual=None, prelu=None,
                 out_dtype=jnp.float32):
    """out = epilogue(a @ b), the epilogue fused into the final-K write.

    residual is None : out = acc*scale + shift
    else             : y = residual + acc*scale + shift ; v = y + b1
                       out = where(v>0, v, alpha*v) + b2   with (b1, alpha, b2)=prelu
    scale/shift/b1/alpha/b2 are per-output-channel (N,) vectors.
    """
    M, K = a.shape
    Kb, N = b.shape
    assert K == Kb

    scale2 = scale.reshape(1, N).astype(jnp.float32)
    shift2 = shift.reshape(1, N).astype(jnp.float32)

    # --- tile selection: exact divisors (no K / N padding) -----------------
    tm = _pick_tile(M, (256, 128, 64, 32, 16, 8))
    pad_m = 0
    if tm is None:                            # M not a multiple of 8 -> pad rows only
        Mp = _round_up(M, 8)
        pad_m = Mp - M
        a = jnp.pad(a, ((0, pad_m), (0, 0)))
        if residual is not None:
            residual = jnp.pad(residual, ((0, pad_m), (0, 0)))
        tm = _pick_tile(Mp, (256, 128, 64, 32, 16, 8))
    Mp = M + pad_m

    if N % 256 == 0:
        tn = 256
    elif N % 128 == 0:
        tn = 128
    else:
        tn = N                                # small N (32 / 64 / num_classes)

    if K % 128 != 0 or K <= 2048:
        tk = K                                # single K block: no acc round trips
    else:
        tk = next(c for c in (512, 384, 256, 128) if K % c == 0)
    nk = K // tk

    grid = (Mp // tm, N // tn, nk)
    a_spec = pl.BlockSpec((tm, tk), lambda i, j, k: (i, k))
    b_spec = pl.BlockSpec((tk, tn), lambda i, j, k: (k, j))
    vec_spec = pl.BlockSpec((1, tn), lambda i, j, k: (0, j))
    mat_spec = pl.BlockSpec((tm, tn), lambda i, j, k: (i, j))

    if residual is None:
        inputs = (a, b, scale2, shift2)
        in_specs = [a_spec, b_spec, vec_spec, vec_spec]
        kernel = _mm_bn_kernel_1k if nk == 1 else _mm_bn_kernel_nk
    else:
        b1, al, b2 = prelu
        inputs = (a, b, scale2, shift2, residual,
                  b1.reshape(1, N).astype(jnp.float32),
                  al.reshape(1, N).astype(jnp.float32),
                  b2.reshape(1, N).astype(jnp.float32))
        in_specs = [a_spec, b_spec, vec_spec, vec_spec, mat_spec,
                    vec_spec, vec_spec, vec_spec]
        kernel = _mm_res_prelu_kernel_1k if nk == 1 else _mm_res_prelu_kernel_nk

    scratch = [] if nk == 1 else [pltpu.VMEM((tm, tn), jnp.float32)]

    out = pl.pallas_call(
        kernel,
        out_shape=jax.ShapeDtypeStruct((Mp, N), out_dtype),
        grid_spec=pltpu.PrefetchScalarGridSpec(
            num_scalar_prefetch=0,
            grid=grid,
            in_specs=in_specs,
            out_specs=mat_spec,
            scratch_shapes=scratch),
        compiler_params=pltpu.CompilerParams(
            dimension_semantics=("parallel", "parallel", "arbitrary")),
    )(*inputs)
    return out[:M] if pad_m else out


# ---------------------------------------------------------------------------
# LearnableBias + BinaryActivation (sign) -> bf16 +/-1, tiled & lane-dense
# ---------------------------------------------------------------------------

def _bias_sign_kernel(x_ref, b_ref, o_ref):
    o_ref[...] = jnp.sign(x_ref[...] + b_ref[...]).astype(o_ref.dtype)


def bias_sign(x2d, bias):
    """sign(x + bias) emitted as bf16. For C < 128, groups of 128//C rows are folded
    into the lane dimension so stores stay lane-dense (last dim multiple of 128)."""
    P, C = x2d.shape
    k = 1
    if C < 128 and 128 % C == 0 and P % (128 // C) == 0:
        k = 128 // C
    rows, cd = P // k, k * C
    xd = x2d.reshape(rows, cd)
    bd = jnp.tile(bias.astype(jnp.float32), k).reshape(1, cd)
    tr = _pick_tile(rows, (512, 256, 128, 64, 32, 16, 8)) or rows
    out = pl.pallas_call(
        _bias_sign_kernel,
        out_shape=jax.ShapeDtypeStruct((rows, cd), jnp.bfloat16),
        grid_spec=pltpu.PrefetchScalarGridSpec(
            num_scalar_prefetch=0,
            grid=(rows // tr,),
            in_specs=[pl.BlockSpec((tr, cd), lambda i: (i, 0)),
                      pl.BlockSpec((1, cd), lambda i: (0, 0))],
            out_specs=pl.BlockSpec((tr, cd), lambda i: (i, 0))),
        compiler_params=pltpu.CompilerParams(dimension_semantics=("parallel",)),
    )(xd, bd)
    return out.reshape(P, C)


# ---------------------------------------------------------------------------
# Conv lowering glue (im2col in plain JAX; matmul + epilogue in Pallas)
# ---------------------------------------------------------------------------

def _im2col(x, kh, kw, stride, pad):
    """x: NHWC. Returns (B*Ho*Wo, kh*kw*C) patches (same dtype as x), Ho, Wo."""
    B, H, W, C = x.shape
    xp = jnp.pad(x, ((0, 0), (pad, pad), (pad, pad), (0, 0))) if pad else x
    Ho = (H + 2 * pad - kh) // stride + 1
    Wo = (W + 2 * pad - kw) // stride + 1
    cols = [xp[:, di:di + stride * Ho:stride, dj:dj + stride * Wo:stride, :]
            for di in range(kh) for dj in range(kw)]
    patches = jnp.stack(cols, axis=3).reshape(B * Ho * Wo, kh * kw * C)
    return patches, Ho, Wo


def _weight_matrix(w):
    # torch OIHW -> (kh*kw*Cin, O), matching the im2col column order (di, dj, c).
    O, I, kh, kw = w.shape
    return jnp.transpose(w, (2, 3, 1, 0)).reshape(kh * kw * I, O)


def _prep_binary_conv(w):
    """HardBinaryConv forward weights are mean|w| * sign(w). The per-output-channel
    scale is folded into the following BN scale, so the matmul operand is pure
    sign(w) carried in bf16 (exact for {-1, 0, +1})."""
    wscale = jnp.mean(jnp.abs(w), axis=(1, 2, 3))            # (O,)
    wmat = _weight_matrix(jnp.sign(w)).astype(jnp.bfloat16)  # (K, O)
    return wmat, wscale


def avgpool2(x):
    B, H, W, C = x.shape
    return x.reshape(B, H // 2, 2, W // 2, 2, C).mean(axis=(2, 4))


# ---------------------------------------------------------------------------
# Parameter initialization (deterministic, shapes from the PyTorch module)
# ---------------------------------------------------------------------------

def init_bn(c):
    gamma = jnp.ones((c,), jnp.float32)
    beta = jnp.zeros((c,), jnp.float32)
    running_mean = jnp.zeros((c,), jnp.float32)
    running_var = jnp.ones((c,), jnp.float32)
    scale = gamma / jnp.sqrt(running_var + BN_EPS)
    shift = beta - running_mean * scale
    return scale, shift


def init_binary_conv_w(key, out_c, in_c, k):
    # torch.rand((out*in*k*k, 1)) * 0.001, viewed as (out, in, k, k)
    w = jax.random.uniform(key, (out_c * in_c * k * k, 1), jnp.float32) * 0.001
    return w.reshape(out_c, in_c, k, k)


def init_first_block(key, inp, oup):
    w = jax.random.normal(key, (oup, inp, 3, 3), jnp.float32) * 0.1
    return {'type': 'first', 'wmat': _weight_matrix(w), 'bn': init_bn(oup),
            'stride': 2}


def init_basic_block(key, inplanes, planes, stride):
    keys = jax.random.split(key, 3)
    p = {'type': 'basic', 'inplanes': inplanes, 'planes': planes, 'stride': stride}
    p['b11'] = jnp.zeros((inplanes,), jnp.float32)
    w3 = init_binary_conv_w(keys[0], inplanes, inplanes, 3)
    p['w3x3_q'], p['w3x3_scale'] = _prep_binary_conv(w3)
    p['bn1'] = init_bn(inplanes)
    p['b12'] = jnp.zeros((inplanes,), jnp.float32)
    p['a1'] = jnp.full((inplanes,), 0.25, jnp.float32)
    p['b13'] = jnp.zeros((inplanes,), jnp.float32)
    p['b21'] = jnp.zeros((inplanes,), jnp.float32)
    if inplanes == planes:
        wp = init_binary_conv_w(keys[1], planes, inplanes, 1)
        p['w_pw_q'], p['w_pw_scale'] = _prep_binary_conv(wp)
        p['bn2'] = init_bn(planes)
    else:
        assert planes == inplanes * 2
        wp1 = init_binary_conv_w(keys[1], inplanes, inplanes, 1)
        wp2 = init_binary_conv_w(keys[2], inplanes, inplanes, 1)
        q1, s1 = _prep_binary_conv(wp1)
        q2, s2 = _prep_binary_conv(wp2)
        p['w_pw12_q'] = jnp.concatenate([q1, q2], axis=1)    # (inplanes, 2*inplanes)
        p['w_pw1_scale'] = s1
        p['w_pw2_scale'] = s2
        p['bn2_1'] = init_bn(inplanes)
        p['bn2_2'] = init_bn(inplanes)
    p['b22'] = jnp.zeros((planes,), jnp.float32)
    p['a2'] = jnp.full((planes,), 0.25, jnp.float32)
    p['b23'] = jnp.zeros((planes,), jnp.float32)
    return p


def init_reactnet(key, num_classes):
    blocks = []
    keys = jax.random.split(key, len(stage_out_channel) + 1)
    for i in range(len(stage_out_channel)):
        if i == 0:
            blocks.append(init_first_block(keys[i], 3, stage_out_channel[i]))
        elif (stage_out_channel[i - 1] != stage_out_channel[i]
              and stage_out_channel[i] != 64):
            blocks.append(init_basic_block(keys[i], stage_out_channel[i - 1],
                                           stage_out_channel[i], 2))
        else:
            blocks.append(init_basic_block(keys[i], stage_out_channel[i - 1],
                                           stage_out_channel[i], 1))
    k_fc, k_fb = jax.random.split(keys[-1])
    fc_w = jax.random.normal(k_fc, (num_classes, 1024), jnp.float32) * 0.01
    fc_b = jax.random.normal(k_fb, (num_classes,), jnp.float32) * 0.01
    return {'blocks': blocks, 'fc_wT': fc_w.T, 'fc_b': fc_b}


# ---------------------------------------------------------------------------
# Forward pass
# ---------------------------------------------------------------------------

def first_block_forward(x, p):
    B = x.shape[0]
    patches, Ho, Wo = _im2col(x, 3, 3, p['stride'], 1)
    y = fused_matmul(patches, p['wmat'], scale=p['bn'][0], shift=p['bn'][1])
    return y.reshape(B, Ho, Wo, -1)


def basic_block_forward(x, p):
    inplanes, planes, stride = p['inplanes'], p['planes'], p['stride']
    B, H, W, C = x.shape
    # move11 + BinaryActivation (sign) -> bf16 +/-1
    s1 = bias_sign(x.reshape(-1, C), p['b11']).reshape(B, H, W, C)
    # binary 3x3 conv with bn1 (x folded weight scale), residual add and
    # move12 + prelu1 + move13 fused into the matmul epilogue.
    patches, Ho, Wo = _im2col(s1, 3, 3, stride, 1)
    xr = avgpool2(x) if stride == 2 else x
    out1 = fused_matmul(
        patches, p['w3x3_q'],
        scale=p['bn1'][0] * p['w3x3_scale'], shift=p['bn1'][1],
        residual=xr.reshape(-1, inplanes),
        prelu=(p['b12'], p['a1'], p['b13']))                  # (B*Ho*Wo, inplanes)
    # move21 + BinaryActivation
    s2 = bias_sign(out1, p['b21'])                            # bf16 +/-1
    if inplanes == planes:
        o = fused_matmul(
            s2, p['w_pw_q'],
            scale=p['bn2'][0] * p['w_pw_scale'], shift=p['bn2'][1],
            residual=out1, prelu=(p['b22'], p['a2'], p['b23']))
    else:
        # Both downsample 1x1 convs merged into one matmul over 2*inplanes output
        # channels (binary activation read from HBM once).  NHWC last-dim concat
        # of the two halves matches the reference NCHW dim=1 concat.
        scale2 = jnp.concatenate([p['bn2_1'][0] * p['w_pw1_scale'],
                                  p['bn2_2'][0] * p['w_pw2_scale']])
        shift2 = jnp.concatenate([p['bn2_1'][1], p['bn2_2'][1]])
        res2 = jnp.concatenate([out1, out1], axis=-1)
        o = fused_matmul(
            s2, p['w_pw12_q'], scale=scale2, shift=shift2,
            residual=res2, prelu=(p['b22'], p['a2'], p['b23']))
    return o.reshape(B, Ho, Wo, planes)


def reactnet_forward(params, x_nchw):
    x = jnp.transpose(x_nchw.astype(jnp.float32), (0, 2, 3, 1))   # NCHW -> NHWC
    x = first_block_forward(x, params['blocks'][0])
    for blk in params['blocks'][1:]:
        x = basic_block_forward(x, blk)
    # AdaptiveAvgPool2d(1) + flatten
    feat = jnp.mean(x, axis=(1, 2))                               # (B, 1024)
    # Linear(1024, num_classes): bias fused as the epilogue shift
    num_classes = params['fc_wT'].shape[1]
    logits = fused_matmul(feat, params['fc_wT'],
                          scale=jnp.ones((num_classes,), jnp.float32),
                          shift=params['fc_b'])
    return {'class_logit': logits}


# ---------------------------------------------------------------------------

if __name__ == "__main__":
    key = jax.random.PRNGKey(0)
    k_params, k_x = jax.random.split(key)

    num_classes = 10
    params = init_reactnet(k_params, num_classes)

    # small input consistent with the module: NCHW, 3 input channels
    x = jax.random.normal(k_x, (2, 3, 32, 32), jnp.float32)

    out = reactnet_forward(params, x)
    logits = jax.block_until_ready(out['class_logit'])
    assert logits.shape == (2, num_classes)
    assert bool(jnp.all(jnp.isfinite(logits)))
    print("KERNEL_OK")
</pallas_src>

<mosaic_0001>
module attributes {stable_mosaic.version = 11 : i64} {
  func.func @_mm_bn_kernel_1k(%arg0: i32, %arg1: i32, %arg2: i32, %arg3: memref<256x27xf32, #tpu.memory_space<vmem>>, %arg4: memref<27x32xf32, #tpu.memory_space<vmem>>, %arg5: memref<1x32xf32, #tpu.memory_space<vmem>>, %arg6: memref<1x32xf32, #tpu.memory_space<vmem>>, %arg7: memref<256x32xf32, #tpu.memory_space<vmem>>) attributes {dimension_semantics = [#tpu.dimension_semantics<parallel>, #tpu.dimension_semantics<parallel>, #tpu.dimension_semantics<arbitrary>], iteration_bounds = array<i64: 2, 1, 1>, scalar_prefetch = 0 : i64, scratch_operands = 0 : i64, tpu.core_type = #tpu.core_type<tc>, window_params = [{transform_indices = @transform_0, window_bounds = array<i64: 256, 27>}, {transform_indices = @transform_1, window_bounds = array<i64: 27, 32>}, {transform_indices = @transform_2, window_bounds = array<i64: 1, 32>}, {transform_indices = @transform_3, window_bounds = array<i64: 1, 32>}, {transform_indices = @transform_4, window_bounds = array<i64: 256, 32>}]} {
    %c0 = arith.constant 0 : index
    %c0_0 = arith.constant 0 : index
    %0 = vector.load %arg3[%c0, %c0_0] : memref<256x27xf32, #tpu.memory_space<vmem>>, vector<256x27xf32>
    %c0_1 = arith.constant 0 : index
    %c0_2 = arith.constant 0 : index
    %1 = vector.load %arg4[%c0_1, %c0_2] : memref<27x32xf32, #tpu.memory_space<vmem>>, vector<27x32xf32>
    %cst = arith.constant dense<0.000000e+00> : vector<256x32xf32>
    %2 = tpu.matmul %0, %1, %cst {dimension_numbers = #tpu.dot_dimension_numbers<[1], [0], [0], [1], [0, 0, 1, 1], [], []>} : vector<256x27xf32>, vector<27x32xf32>, vector<256x32xf32> -> vector<256x32xf32>
    %c0_3 = arith.constant 0 : index
    %c0_4 = arith.constant 0 : index
    %3 = vector.load %arg5[%c0_3, %c0_4] : memref<1x32xf32, #tpu.memory_space<vmem>>, vector<1x32xf32>
    %4 = vector.broadcast %3 : vector<1x32xf32> to vector<256x32xf32>
    %5 = arith.mulf %2, %4 : vector<256x32xf32>
    %c0_5 = arith.constant 0 : index
    %c0_6 = arith.constant 0 : index
    %6 = vector.load %arg6[%c0_5, %c0_6] : memref<1x32xf32, #tpu.memory_space<vmem>>, vector<1x32xf32>
    %7 = vector.broadcast %6 : vector<1x32xf32> to vector<256x32xf32>
    %8 = arith.addf %5, %7 : vector<256x32xf32>
    %c0_7 = arith.constant 0 : index
    %c0_8 = arith.constant 0 : index
    %9 = vector.load %arg7[%c0_7, %c0_8] : memref<256x32xf32, #tpu.memory_space<vmem>>, vector<256x32xf32>
    tpu.vector_store %arg7[%c0_7, %c0_8], %8 {strides = array<i32>} : memref<256x32xf32, #tpu.memory_space<vmem>>, vector<256x32xf32>,
    return
  }
  func.func @transform_0(%arg0: i32, %arg1: i32, %arg2: i32) -> (i32, i32) {
    %c0_i32 = arith.constant 0 : i32
    return %arg0, %arg2 : i32, i32
  }
  func.func @transform_1(%arg0: i32, %arg1: i32, %arg2: i32) -> (i32, i32) {
    %c0_i32 = arith.constant 0 : i32
    return %arg2, %arg1 : i32, i32
  }
  func.func @transform_2(%arg0: i32, %arg1: i32, %arg2: i32) -> (i32, i32) {
    %c0_i32 = arith.constant 0 : i32
    %c0_i32_0 = arith.constant 0 : i32
    return %c0_i32, %arg1 : i32, i32
  }
  func.func @transform_3(%arg0: i32, %arg1: i32, %arg2: i32) -> (i32, i32) {
    %c0_i32 = arith.constant 0 : i32
    %c0_i32_0 = arith.constant 0 : i32
    return %c0_i32, %arg1 : i32, i32
  }
  func.func @transform_4(%arg0: i32, %arg1: i32, %arg2: i32) -> (i32, i32) {
    %c0_i32 = arith.constant 0 : i32
    return %arg0, %arg1 : i32, i32
  }
}

</mosaic_0001>

<llo_original>
// kernel: tpu_custom_call.1
$region0: #{tpu_custom_call.1}
  #allocation0 [shape = 'u32[]', space=smem, size = 0x4, offset = 0x4, fixed_abs, tag = 'smem constant byte address 0x4 - core index']
  #allocation1 [shape = 'u32[72,128]{1,0:T(1,128)}', space=vmem, size = 0x9000, scoped, tag = 'internal scratch']
  %s0 = inlined_call_operand.vmem [shape: f32[512,27], index: 0, kind: input, shape index: {}]
  %s1 = inlined_call_operand.vmem [shape: f32[27,32], index: 1, kind: input, shape index: {}]
  %s2 = inlined_call_operand.vmem [shape: f32[1,32], index: 2, kind: input, shape index: {}]
  %s3 = inlined_call_operand.vmem [shape: f32[1,32], index: 3, kind: input, shape index: {}]
  %s4 = inlined_call_operand.vmem [shape: f32[512,32], index: 4, kind: output, shape index: {}]
  %s5 = sld [smem:[#allocation0]]
  $region49: #{tpu_custom_call.1} parent=0
    _
  %s7 = ssub.s32 1, %s5
  %s8 = scalar_select 0, %s7, %s5
  loop: start=0, step=1, limit=4
  $region2: #{tpu_custom_call.1} parent=0 // loop_pre_header
    _
  $region3: #{tpu_custom_call.1} parent=0 // loop_header
    %s10 = sphi 0, %s14
    %p11 = scmp.ge.s32.totalorder %s10, 4
    %s17 = sphi 0, %s36
    %s18 = sphi 0, %s32
    %s19 = sphi 0, %s28
    %s20 = sphi 0, %s17
    %s21 = sphi 0, %s18
    %s22 = sphi 0, %s19
    %s23 = sphi 0, %s20
    %s24 = sphi 0, %s21
    %s25 = sphi 0, %s22
    %s41 = sphi 0, %s43
    %s44 = sphi 0, %s41
    %s45 = sphi 0, %s44
    %s61 = sphi 0, %s45
    %s69 = sphi 0, %s71
    %s72 = sphi 0, %s69
    %s73 = sphi 0, %s72
    %s89 = sphi 0, %s73
    %s95 = sphi 0, %s97
    %s98 = sphi 0, %s95
    %s99 = sphi 0, %s98
    %s115 = sphi 0, %s99
    %s121 = sphi 0, %s123
    %s124 = sphi 0, %s121
    %s125 = sphi 0, %s124
    %s141 = sphi 0, %s125
    %s149 = sphi 0, %s151
    %s152 = sphi 0, %s149
    %s153 = sphi 0, %s152
    %s169 = sphi 0, %s153
  $region4: #{tpu_custom_call.1} parent=0 // loop_header_branch
    %13 = sbr.rel (%p11) target = $region8
  $region5: #{tpu_custom_call.1} parent=0 // loop_body
    %s15 = ssub.s32 %s10, 1
    %s16 = ssub.s32 %s10, 2
    %s26 = sadd.s32 1, %s19
    %p27 = scmp.ge.s32.totalorder %s26, 1
    %s28 = scalar_select %p27, 0, %s26
    %s29 = sadd.s32 1, %s18
    %s30 = scalar_select %p27, %s29, %s18
    %p31 = scmp.ge.s32.totalorder %s30, 1
    %s32 = scalar_select %p31, 0, %s30
    %s33 = sadd.s32 1, %s17
    %s34 = scalar_select %p31, %s33, %s17
    %p35 = scmp.ge.s32.totalorder %s34, 2
    %s36 = scalar_select %p35, 0, %s34
    %s37 = ssub.s32 %s17, %s36
    %s38 = ssub.s32 %s19, %s28
    %s39 = sor.u32 %s37, %s38
    %p40 = scmp.eq.s32.totalorder %s39, 0
    %s42 = sadd.s32 %s41, 1
    %s43 = scalar_select %p40, %s41, %s42
    %p46 = pneg %p40
    %p47 = scmp.eq.s32.totalorder %s10, 1
    %p48 = por %p46, %p47
    %p49 = scmp.ne.s32.totalorder %s41, %s44
    %p50 = scmp.eq.s32.totalorder %s10, 0
    %p51 = por %p49, %p50
    %p52 = scmp.ne.s32.totalorder %s41, %s44
    %p53 = scmp.eq.s32.totalorder %s15, 1
    %p54 = por %p52, %p53
    %p55 = scmp.ne.s32.totalorder %s44, %s45
    %p56 = scmp.eq.s32.totalorder %s15, 0
    %p57 = por %p55, %p56
    %p58 = scmp.ne.s32.totalorder %s44, %s45
    %p59 = scmp.eq.s32.totalorder %s16, 1
    %p60 = por %p58, %p59
    %p62 = scmp.ne.s32.totalorder %s45, %s61
    %p63 = scmp.eq.s32.totalorder %s16, 0
    %p64 = por %p62, %p63
    %s65 = ssub.s32 %s19, %s28
    %s66 = ssub.s32 %s18, %s32
    %s67 = sor.u32 %s65, %s66
    %p68 = scmp.eq.s32.totalorder %s67, 0
    %s70 = sadd.s32 %s69, 1
    %s71 = scalar_select %p68, %s69, %s70
    %p74 = pneg %p68
    %p75 = scmp.eq.s32.totalorder %s10, 1
    %p76 = por %p74, %p75
    %p77 = scmp.ne.s32.totalorder %s69, %s72
    %p78 = scmp.eq.s32.totalorder %s10, 0
    %p79 = por %p77, %p78
    %p80 = scmp.ne.s32.totalorder %s69, %s72
    %p81 = scmp.eq.s32.totalorder %s15, 1
    %p82 = por %p80, %p81
    %p83 = scmp.ne.s32.totalorder %s72, %s73
    %p84 = scmp.eq.s32.totalorder %s15, 0
    %p85 = por %p83, %p84
    %p86 = scmp.ne.s32.totalorder %s72, %s73
    %p87 = scmp.eq.s32.totalorder %s16, 1
    %p88 = por %p86, %p87
    %p90 = scmp.ne.s32.totalorder %s73, %s89
    %p91 = scmp.eq.s32.totalorder %s16, 0
    %p92 = por %p90, %p91
    %s93 = ssub.s32 %s18, %s32
    %p94 = scmp.eq.s32.totalorder %s93, 0
    %s96 = sadd.s32 %s95, 1
    %s97 = scalar_select %p94, %s95, %s96
    %p100 = pneg %p94
    %p101 = scmp.eq.s32.totalorder %s10, 1
    %p102 = por %p100, %p101
    %p103 = scmp.ne.s32.totalorder %s95, %s98
    %p104 = scmp.eq.s32.totalorder %s10, 0
    %p105 = por %p103, %p104
    %p106 = scmp.ne.s32.totalorder %s95, %s98
    %p107 = scmp.eq.s32.totalorder %s15, 1
    %p108 = por %p106, %p107
    %p109 = scmp.ne.s32.totalorder %s98, %s99
    %p110 = scmp.eq.s32.totalorder %s15, 0
    %p111 = por %p109, %p110
    %p112 = scmp.ne.s32.totalorder %s98, %s99
    %p113 = scmp.eq.s32.totalorder %s16, 1
    %p114 = por %p112, %p113
    %p116 = scmp.ne.s32.totalorder %s99, %s115
    %p117 = scmp.eq.s32.totalorder %s16, 0
    %p118 = por %p116, %p117
    %s119 = ssub.s32 %s18, %s32
    %p120 = scmp.eq.s32.totalorder %s119, 0
    %s122 = sadd.s32 %s121, 1
    %s123 = scalar_select %p120, %s121, %s122
    %p126 = pneg %p120
    %p127 = scmp.eq.s32.totalorder %s10, 1
    %p128 = por %p126, %p127
    %p129 = scmp.ne.s32.totalorder %s121, %s124
    %p130 = scmp.eq.s32.totalorder %s10, 0
    %p131 = por %p129, %p130
    %p132 = scmp.ne.s32.totalorder %s121, %s124
    %p133 = scmp.eq.s32.totalorder %s15, 1
    %p134 = por %p132, %p133
    %p135 = scmp.ne.s32.totalorder %s124, %s125
    %p136 = scmp.eq.s32.totalorder %s15, 0
    %p137 = por %p135, %p136
    %p138 = scmp.ne.s32.totalorder %s124, %s125
    %p139 = scmp.eq.s32.totalorder %s16, 1
    %p140 = por %p138, %p139
    %p142 = scmp.ne.s32.totalorder %s125, %s141
    %p143 = scmp.eq.s32.totalorder %s16, 0
    %p144 = por %p142, %p143
    %s145 = ssub.s32 %s17, %s36
    %s146 = ssub.s32 %s18, %s32
    %s147 = sor.u32 %s145, %s146
    %p148 = scmp.eq.s32.totalorder %s147, 0
    %s150 = sadd.s32 %s149, 1
    %s151 = scalar_select %p148, %s149, %s150
    %p154 = pneg %p148
    %p155 = scmp.eq.s32.totalorder %s10, 1
    %p156 = por %p154, %p155
    %p157 = scmp.ne.s32.totalorder %s149, %s152
    %p158 = scmp.eq.s32.totalorder %s10, 0
    %p159 = por %p157, %p158
    %p160 = scmp.ne.s32.totalorder %s149, %s152
    %p161 = scmp.eq.s32.totalorder %s15, 1
    %p162 = por %p160, %p161
    %p163 = scmp.ne.s32.totalorder %s152, %s153
    %p164 = scmp.eq.s32.totalorder %s15, 0
    %p165 = por %p163, %p164
    %p166 = scmp.ne.s32.totalorder %s152, %s153
    %p167 = scmp.eq.s32.totalorder %s16, 1
    %p168 = por %p166, %p167
    %p170 = scmp.ne.s32.totalorder %s153, %s169
    %p171 = scmp.eq.s32.totalorder %s16, 0
    %p172 = por %p170, %p171
    %p173 = scmp.le.s32.totalorder 1, %s10
    %p174 = scmp.lt.s32.totalorder %s10, 3
    %p175 = pnand %p173, %p174
    %p176 = pneg %p175
    // Predicated region
    $region9: #{tpu_custom_call.1} parent=5 // pred_check
      _
    $region10: #{tpu_custom_call.1} parent=5 // pred_check_branch
      %178 = sbr.rel (%p175) target = $region12
    $region11: #{tpu_custom_call.1} parent=5 // pred_region
      %s179 = ssub.s32 %s10, 1
      // Predicated region
      $region13: #{tpu_custom_call.1} parent=11 // pred_check
        %p180 = pneg %p85
      $region14: #{tpu_custom_call.1} parent=11 // pred_check_branch
        %182 = sbr.rel (%p180) target = $region16
      $region15: #{tpu_custom_call.1} parent=11 // pred_region
        %s183 = smul.u32 4, %s22
        %p184 = scmp.lt.s32.totalorder %s183, 3
        %s185 = scalar_select %p184, %s183, 3
        %p186 = scmp.lt.s32.totalorder %s21, 0
        %s187 = scalar_select %p186, %s21, 0
        %s188 = sadd.s32 %s187, %s185
        %s189 = smul.addr %s188, 8
        %s190 = scalar_lea.vmem %s1, %s189
        %s191 = smul.u32 4, %s22
      $region16: #{tpu_custom_call.1} parent=11 // pred_fallthru
        _
      // Predicated region
      $region17: #{tpu_custom_call.1} parent=11 // pred_check
        %p192 = pneg %p111
      $region18: #{tpu_custom_call.1} parent=11 // pred_check_branch
        %194 = sbr.rel (%p192) target = $region20
      $region19: #{tpu_custom_call.1} parent=11 // pred_region
        %p195 = scmp.lt.s32.totalorder %s21, 0
        %s196 = scalar_select %p195, %s21, 0
        %s197 = scalar_lea.vmem %s2, %s196
      $region20: #{tpu_custom_call.1} parent=11 // pred_fallthru
        _
      // Predicated region
      $region21: #{tpu_custom_call.1} parent=11 // pred_check
        %p198 = pneg %p137
      $region22: #{tpu_custom_call.1} parent=11 // pred_check_branch
        %200 = sbr.rel (%p198) target = $region24
      $region23: #{tpu_custom_call.1} parent=11 // pred_region
        %p201 = scmp.lt.s32.totalorder %s21, 0
        %s202 = scalar_select %p201, %s21, 0
        %s203 = scalar_lea.vmem %s3, %s202
      $region24: #{tpu_custom_call.1} parent=11 // pred_fallthru
        _
    $region12: #{tpu_custom_call.1} parent=5 // pred_fallthru
      _
    %p204 = scmp.lt.s32.totalorder %s10, 2
    // Predicated region
    $region25: #{tpu_custom_call.1} parent=5 // pred_check
      %p205 = pneg %p204
    $region26: #{tpu_custom_call.1} parent=5 // pred_check_branch
      %207 = sbr.rel (%p205) target = $region28
    $region27: #{tpu_custom_call.1} parent=5 // pred_region
      // Predicated region
      $region29: #{tpu_custom_call.1} parent=27 // pred_check
        %p208 = pneg %p51
      $region30: #{tpu_custom_call.1} parent=27 // pred_check_branch
        %210 = sbr.rel (%p208) target = $region32
      $region31: #{tpu_custom_call.1} parent=27 // pred_region
        %s211 = smul.u32 32, %s17
        %p212 = scmp.lt.s32.totalorder %s211, 63
        %s213 = scalar_select %p212, %s211, 63
        %p214 = scmp.lt.s32.totalorder %s19, 0
        %s215 = scalar_select %p214, %s19, 0
        %s216 = sadd.s32 %s215, %s213
        %s217 = smul.addr %s216, 8
        %s218 = scalar_lea.vmem %s0, %s217
        %s219 = smul.u32 32, %s17
      $region32: #{tpu_custom_call.1} parent=27 // pred_fallthru
        _
    $region28: #{tpu_custom_call.1} parent=5 // pred_fallthru
      _
    %p220 = scmp.le.s32.totalorder 1, %s10
    %p221 = scmp.lt.s32.totalorder %s10, 3
    %p222 = pnand %p220, %p221
    %p223 = pneg %p222
    // Predicated region
    $region33: #{tpu_custom_call.1} parent=5 // pred_check
      _
    $region34: #{tpu_custom_call.1} parent=5 // pred_check_branch
      %225 = sbr.rel (%p222) target = $region36
    $region35: #{tpu_custom_call.1} parent=5 // pred_region
      %s226 = ssub.s32 %s10, 1
      %s227 = smul.u32 32, %s20
      %p228 = scmp.lt.s32.totalorder %s227, 63
      %s229 = scalar_select %p228, %s227, 63
      %p230 = scmp.lt.s32.totalorder %s22, 0
      %s231 = scalar_select %p230, %s22, 0
      %s232 = sadd.s32 %s231, %s229
      %s233 = smul.addr %s232, 8
      %s234 = scalar_lea.vmem %s0, %s233
      %p235 = pneg %p57
      %p236 = pneg %p54
      %s237 = smul.u32 4, %s22
      %p238 = scmp.lt.s32.totalorder %s237, 3
      %s239 = scalar_select %p238, %s237, 3
      %p240 = scmp.lt.s32.totalorder %s21, 0
      %s241 = scalar_select %p240, %s21, 0
      %s242 = sadd.s32 %s241, %s239
      %s243 = smul.addr %s242, 8
      %s244 = scalar_lea.vmem %s1, %s243
      %p245 = pneg %p85
      %p246 = pneg %p82
      %p247 = scmp.lt.s32.totalorder %s21, 0
      %s248 = scalar_select %p247, %s21, 0
      %s249 = scalar_lea.vmem %s2, %s248
      %p250 = pneg %p111
      %p251 = pneg %p108
      %p252 = scmp.lt.s32.totalorder %s21, 0
      %s253 = scalar_select %p252, %s21, 0
      %s254 = scalar_lea.vmem %s3, %s253
      %p255 = pneg %p137
      %p256 = pneg %p134
      %p257 = pneg %p165
      %p258 = pneg %p162
      %s259 = smul.u32 32, %s20
      %p260 = scmp.lt.s32.totalorder %s259, 63
      %s261 = scalar_select %p260, %s259, 63
      %p262 = scmp.lt.s32.totalorder %s21, 0
      %s263 = scalar_select %p262, %s21, 0
      %s264 = sadd.s32 %s263, %s261
      %s265 = smul.addr %s264, 8
      %s266 = scalar_lea.vmem %s4, %s265
      %s267 = smul.u32 32, %s20
      %p268 = scmp.lt.s32.totalorder %s267, 63
      %s269 = scalar_select %p268, %s267, 63
      %p270 = scmp.lt.s32.totalorder %s22, 0
      %s271 = scalar_select %p270, %s22, 0
      %s272 = sadd.s32 %s271, %s269
      %s273 = smul.addr %s272, 8
      %s274 = scalar_lea.vmem %s0, %s273
      %s275 = smul.u32 32, %s20
      %s276 = smul.u32 4, %s22
      %p277 = scmp.lt.s32.totalorder %s276, 3
      %s278 = scalar_select %p277, %s276, 3
      %p279 = scmp.lt.s32.totalorder %s21, 0
      %s280 = scalar_select %p279, %s21, 0
      %s281 = sadd.s32 %s280, %s278
      %s282 = smul.addr %s281, 8
      %s283 = scalar_lea.vmem %s1, %s282
      %s284 = smul.u32 4, %s22
      %p285 = scmp.lt.s32.totalorder %s21, 0
      %s286 = scalar_select %p285, %s21, 0
      %s287 = scalar_lea.vmem %s2, %s286
      %p288 = scmp.lt.s32.totalorder %s21, 0
      %s289 = scalar_select %p288, %s21, 0
      %s290 = scalar_lea.vmem %s3, %s289
      %s291 = smul.u32 32, %s20
      %p292 = scmp.lt.s32.totalorder %s291, 63
      %s293 = scalar_select %p292, %s291, 63
      %p294 = scmp.lt.s32.totalorder %s21, 0
      %s295 = scalar_select %p294, %s21, 0
      %s296 = sadd.s32 %s295, %s293
      %s297 = smul.addr %s296, 8
      %s298 = scalar_lea.vmem %s4, %s297
      %s299 = smul.u32 32, %s20
      %v300 = vld [vmem:[%s274] sm:$0xff]
      %v301 = vld [vmem:[%s274 + $0x8] sm:$0xff]
      %v302 = vld [vmem:[%s274 + $0x10] sm:$0xff]
      %v303 = vld [vmem:[%s274 + $0x18] sm:$0xff]
      %v304 = vld [vmem:[%s274 + $0x20] sm:$0xff]
      %v305 = vld [vmem:[%s274 + $0x28] sm:$0xff]
      %v306 = vld [vmem:[%s274 + $0x30] sm:$0xff]
      %v307 = vld [vmem:[%s274 + $0x38] sm:$0xff]
      %v308 = vld [vmem:[%s274 + $0x40] sm:$0xff]
      %v309 = vld [vmem:[%s274 + $0x48] sm:$0xff]
      %v310 = vld [vmem:[%s274 + $0x50] sm:$0xff]
      %v311 = vld [vmem:[%s274 + $0x58] sm:$0xff]
      %v312 = vld [vmem:[%s274 + $0x60] sm:$0xff]
      %v313 = vld [vmem:[%s274 + $0x68] sm:$0xff]
      %v314 = vld [vmem:[%s274 + $0x70] sm:$0xff]
      %v315 = vld [vmem:[%s274 + $0x78] sm:$0xff]
      %v316 = vld [vmem:[%s274 + $0x80] sm:$0xff]
      %v317 = vld [vmem:[%s274 + $0x88] sm:$0xff]
      %v318 = vld [vmem:[%s274 + $0x90] sm:$0xff]
      %v319 = vld [vmem:[%s274 + $0x98] sm:$0xff]
      %v320 = vld [vmem:[%s274 + $0xa0] sm:$0xff]
      %v321 = vld [vmem:[%s274 + $0xa8] sm:$0xff]
      %v322 = vld [vmem:[%s274 + $0xb0] sm:$0xff]
      %v323 = vld [vmem:[%s274 + $0xb8] sm:$0xff]
      %v324 = vld [vmem:[%s274 + $0xc0] sm:$0xff]
      %v325 = vld [vmem:[%s274 + $0xc8] sm:$0xff]
      %v326 = vld [vmem:[%s274 + $0xd0] sm:$0xff]
      %v327 = vld [vmem:[%s274 + $0xd8] sm:$0xff]
      %v328 = vld [vmem:[%s274 + $0xe0] sm:$0xff]
      %v329 = vld [vmem:[%s274 + $0xe8] sm:$0xff]
      %v330 = vld [vmem:[%s274 + $0xf0] sm:$0xff]
      %v331 = vld [vmem:[%s274 + $0xf8] sm:$0xff]
      %v332 = vld [vmem:[%s283] sm:$0xff]
      %v333 = vld [vmem:[%s283 + $0x8] sm:$0xff]
      %v334 = vld [vmem:[%s283 + $0x10] sm:$0xff]
      %v335 = vld [vmem:[%s283 + $0x18] sm:$0x7]
      %vm336 = vcmask 220160
      %v338 = vsel %vm336, %v300, 0
      %v341 = vsel %vm336, %v301, 0
      %v344 = vsel %vm336, %v302, 0
      %v347 = vsel %vm336, %v303, 0
      %v350 = vsel %vm336, %v304, 0
      %v353 = vsel %vm336, %v305, 0
      %v356 = vsel %vm336, %v306, 0
      %v359 = vsel %vm336, %v307, 0
      %v362 = vsel %vm336, %v308, 0
      %v365 = vsel %vm336, %v309, 0
      %v368 = vsel %vm336, %v310, 0
      %v371 = vsel %vm336, %v311, 0
      %v374 = vsel %vm336, %v312, 0
      %v377 = vsel %vm336, %v313, 0
      %v380 = vsel %vm336, %v314, 0
      %v383 = vsel %vm336, %v315, 0
      %v386 = vsel %vm336, %v316, 0
      %v389 = vsel %vm336, %v317, 0
      %v392 = vsel %vm336, %v318, 0
      %v395 = vsel %vm336, %v319, 0
      %v398 = vsel %vm336, %v320, 0
      %v401 = vsel %vm336, %v321, 0
      %v404 = vsel %vm336, %v322, 0
      %v407 = vsel %vm336, %v323, 0
      %v410 = vsel %vm336, %v324, 0
      %v413 = vsel %vm336, %v325, 0
      %v416 = vsel %vm336, %v326, 0
      %v419 = vsel %vm336, %v327, 0
      %v422 = vsel %vm336, %v328, 0
      %v425 = vsel %vm336, %v329, 0
      %v428 = vsel %vm336, %v330, 0
      %v431 = vsel %vm336, %v331, 0
      %vm433 = vcmask 1042432
      %v435 = vsel %vm433, %v335, 0
      %437 = vmatpush.msra.mxu0 0.0
      %438 = vmatpush.msra.mxu0 0.0
      %439 = vmatpush.msra.mxu0 0.0
      %440 = vmatpush.msra.mxu0 0.0
      %441 = vmatpush.msra.mxu0 0.0
      %442 = vmatpush.msra.mxu0 0.0
      %443 = vmatpush.msra.mxu0 0.0
      %444 = vmatpush.msra.mxu0 0.0
      %445 = vmatpush.msra.mxu0 0.0
      %446 = vmatpush.msra.mxu0 0.0
      %447 = vmatpush.msra.mxu0 0.0
      %448 = vmatpush.msra.mxu0 0.0
      %449 = vmatpush.msra.mxu0 %v435
      %450 = vmatpush.msra.mxu0 %v334
      %451 = vmatpush.msra.mxu0 %v333
      %452 = vmatpush.msra.mxu0 %v332
      %453 = vmatmul.f32.gmra.mxu0 %v338
      %v454 = vpop.f32.mrf.mxu0
      %v455 = vadd.f32 0.0, %v454
      %456 = vmatmul.f32.gmra.mxu0 %v341
      %v457 = vpop.f32.mrf.mxu0
      %v458 = vadd.f32 0.0, %v457
      %459 = vmatmul.f32.gmra.mxu0 %v344
      %v460 = vpop.f32.mrf.mxu0
      %v461 = vadd.f32 0.0, %v460
      %462 = vmatmul.f32.gmra.mxu0 %v347
      %v463 = vpop.f32.mrf.mxu0
      %v464 = vadd.f32 0.0, %v463
      %465 = vmatmul.f32.gmra.mxu0 %v350
      %v466 = vpop.f32.mrf.mxu0
      %v467 = vadd.f32 0.0, %v466
      %468 = vmatmul.f32.gmra.mxu0 %v353
      %v469 = vpop.f32.mrf.mxu0
      %v470 = vadd.f32 0.0, %v469
      %471 = vmatmul.f32.gmra.mxu0 %v356
      %v472 = vpop.f32.mrf.mxu0
      %v473 = vadd.f32 0.0, %v472
      %474 = vmatmul.f32.gmra.mxu0 %v359
      %v475 = vpop.f32.mrf.mxu0
      %v476 = vadd.f32 0.0, %v475
      %477 = vmatmul.f32.gmra.mxu0 %v362
      %v478 = vpop.f32.mrf.mxu0
      %v479 = vadd.f32 0.0, %v478
      %480 = vmatmul.f32.gmra.mxu0 %v365
      %v481 = vpop.f32.mrf.mxu0
      %v482 = vadd.f32 0.0, %v481
      %483 = vmatmul.f32.gmra.mxu0 %v368
      %v484 = vpop.f32.mrf.mxu0
      %v485 = vadd.f32 0.0, %v484
      %486 = vmatmul.f32.gmra.mxu0 %v371
      %v487 = vpop.f32.mrf.mxu0
      %v488 = vadd.f32 0.0, %v487
      %489 = vmatmul.f32.gmra.mxu0 %v374
      %v490 = vpop.f32.mrf.mxu0
      %v491 = vadd.f32 0.0, %v490
      %492 = vmatmul.f32.gmra.mxu0 %v377
      %v493 = vpop.f32.mrf.mxu0
      %v494 = vadd.f32 0.0, %v493
      %495 = vmatmul.f32.gmra.mxu0 %v380
      %v496 = vpop.f32.mrf.mxu0
      %v497 = vadd.f32 0.0, %v496
      %498 = vmatmul.f32.gmra.mxu0 %v383
      %v499 = vpop.f32.mrf.mxu0
      %v500 = vadd.f32 0.0, %v499
      %501 = vmatmul.f32.gmra.mxu0 %v386
      %v502 = vpop.f32.mrf.mxu0
      %v503 = vadd.f32 0.0, %v502
      %504 = vmatmul.f32.gmra.mxu0 %v389
      %v505 = vpop.f32.mrf.mxu0
      %v506 = vadd.f32 0.0, %v505
      %507 = vmatmul.f32.gmra.mxu0 %v392
      %v508 = vpop.f32.mrf.mxu0
      %v509 = vadd.f32 0.0, %v508
      %510 = vmatmul.f32.gmra.mxu0 %v395
      %v511 = vpop.f32.mrf.mxu0
      %v512 = vadd.f32 0.0, %v511
      %513 = vmatmul.f32.gmra.mxu0 %v398
      %v514 = vpop.f32.mrf.mxu0
      %v515 = vadd.f32 0.0, %v514
      %516 = vmatmul.f32.gmra.mxu0 %v401
      %v517 = vpop.f32.mrf.mxu0
      %v518 = vadd.f32 0.0, %v517
      %519 = vmatmul.f32.gmra.mxu0 %v404
      %v520 = vpop.f32.mrf.mxu0
      %v521 = vadd.f32 0.0, %v520
      %522 = vmatmul.f32.gmra.mxu0 %v407
      %v523 = vpop.f32.mrf.mxu0
      %v524 = vadd.f32 0.0, %v523
      %525 = vmatmul.f32.gmra.mxu0 %v410
      %v526 = vpop.f32.mrf.mxu0
      %v527 = vadd.f32 0.0, %v526
      %528 = vmatmul.f32.gmra.mxu0 %v413
      %v529 = vpop.f32.mrf.mxu0
      %v530 = vadd.f32 0.0, %v529
      %531 = vmatmul.f32.gmra.mxu0 %v416
      %v532 = vpop.f32.mrf.mxu0
      %v533 = vadd.f32 0.0, %v532
      %534 = vmatmul.f32.gmra.mxu0 %v419
      %v535 = vpop.f32.mrf.mxu0
      %v536 = vadd.f32 0.0, %v535
      %537 = vmatmul.f32.gmra.mxu0 %v422
      %v538 = vpop.f32.mrf.mxu0
      %v539 = vadd.f32 0.0, %v538
      %540 = vmatmul.f32.gmra.mxu0 %v425
      %v541 = vpop.f32.mrf.mxu0
      %v542 = vadd.f32 0.0, %v541
      %543 = vmatmul.f32.gmra.mxu0 %v428
      %v544 = vpop.f32.mrf.mxu0
      %v545 = vadd.f32 0.0, %v544
      %546 = vmatmul.f32.gmra.mxu0 %v431
      %v547 = vpop.f32.mrf.mxu0
      %v548 = vadd.f32 0.0, %v547
      %549 = vdwg.mxu0
      %v550 = vld [vmem:[%s287] sm:$0x1]
      %v552 = vperm.slane %v550, 0
      %v554 = vmul.f32 %v455, %v552
      %v555 = vmul.f32 %v458, %v552
      %v556 = vmul.f32 %v461, %v552
      %v557 = vmul.f32 %v464, %v552
      %v558 = vmul.f32 %v467, %v552
      %v559 = vmul.f32 %v470, %v552
      %v560 = vmul.f32 %v473, %v552
      %v561 = vmul.f32 %v476, %v552
      %v562 = vmul.f32 %v479, %v552
      %v563 = vmul.f32 %v482, %v552
      %v564 = vmul.f32 %v485, %v552
      %v565 = vmul.f32 %v488, %v552
      %v566 = vmul.f32 %v491, %v552
      %v567 = vmul.f32 %v494, %v552
      %v568 = vmul.f32 %v497, %v552
      %v569 = vmul.f32 %v500, %v552
      %v570 = vmul.f32 %v503, %v552
      %v571 = vmul.f32 %v506, %v552
      %v572 = vmul.f32 %v509, %v552
      %v573 = vmul.f32 %v512, %v552
      %v574 = vmul.f32 %v515, %v552
      %v575 = vmul.f32 %v518, %v552
      %v576 = vmul.f32 %v521, %v552
      %v577 = vmul.f32 %v524, %v552
      %v578 = vmul.f32 %v527, %v552
      %v579 = vmul.f32 %v530, %v552
      %v580 = vmul.f32 %v533, %v552
      %v581 = vmul.f32 %v536, %v552
      %v582 = vmul.f32 %v539, %v552
      %v583 = vmul.f32 %v542, %v552
      %v584 = vmul.f32 %v545, %v552
      %v585 = vmul.f32 %v548, %v552
      %v586 = vld [vmem:[%s290] sm:$0x1]
      %v588 = vperm.slane %v586, 0
      %v590 = vadd.f32 %v554, %v588
      %v591 = vadd.f32 %v555, %v588
      %v592 = vadd.f32 %v556, %v588
      %v593 = vadd.f32 %v557, %v588
      %v594 = vadd.f32 %v558, %v588
      %v595 = vadd.f32 %v559, %v588
      %v596 = vadd.f32 %v560, %v588
      %v597 = vadd.f32 %v561, %v588
      %v598 = vadd.f32 %v562, %v588
      %v599 = vadd.f32 %v563, %v588
      %v600 = vadd.f32 %v564, %v588
      %v601 = vadd.f32 %v565, %v588
      %v602 = vadd.f32 %v566, %v588
      %v603 = vadd.f32 %v567, %v588
      %v604 = vadd.f32 %v568, %v588
      %v605 = vadd.f32 %v569, %v588
      %v606 = vadd.f32 %v570, %v588
      %v607 = vadd.f32 %v571, %v588
      %v608 = vadd.f32 %v572, %v588
      %v609 = vadd.f32 %v573, %v588
      %v610 = vadd.f32 %v574, %v588
      %v611 = vadd.f32 %v575, %v588
      %v612 = vadd.f32 %v576, %v588
      %v613 = vadd.f32 %v577, %v588
      %v614 = vadd.f32 %v578, %v588
      %v615 = vadd.f32 %v579, %v588
      %v616 = vadd.f32 %v580, %v588
      %v617 = vadd.f32 %v581, %v588
      %v618 = vadd.f32 %v582, %v588
      %v619 = vadd.f32 %v583, %v588
      %v620 = vadd.f32 %v584, %v588
      %v621 = vadd.f32 %v585, %v588
      %vm622 = vcmask 261120
      %623 = vst.msk [vmem:[%s298] sm:$0xff] %vm622, %v590
      %624 = vst.msk [vmem:[%s298 + $0x8] sm:$0xff] %vm622, %v591
      %625 = vst.msk [vmem:[%s298 + $0x10] sm:$0xff] %vm622, %v592
      %626 = vst.msk [vmem:[%s298 + $0x18] sm:$0xff] %vm622, %v593
      %627 = vst.msk [vmem:[%s298 + $0x20] sm:$0xff] %vm622, %v594
      %628 = vst.msk [vmem:[%s298 + $0x28] sm:$0xff] %vm622, %v595
      %629 = vst.msk [vmem:[%s298 + $0x30] sm:$0xff] %vm622, %v596
      %630 = vst.msk [vmem:[%s298 + $0x38] sm:$0xff] %vm622, %v597
      %631 = vst.msk [vmem:[%s298 + $0x40] sm:$0xff] %vm622, %v598
      %632 = vst.msk [vmem:[%s298 + $0x48] sm:$0xff] %vm622, %v599
      %633 = vst.msk [vmem:[%s298 + $0x50] sm:$0xff] %vm622, %v600
      %634 = vst.msk [vmem:[%s298 + $0x58] sm:$0xff] %vm622, %v601
      %635 = vst.msk [vmem:[%s298 + $0x60] sm:$0xff] %vm622, %v602
      %636 = vst.msk [vmem:[%s298 + $0x68] sm:$0xff] %vm622, %v603
      %637 = vst.msk [vmem:[%s298 + $0x70] sm:$0xff] %vm622, %v604
      %638 = vst.msk [vmem:[%s298 + $0x78] sm:$0xff] %vm622, %v605
      %639 = vst.msk [vmem:[%s298 + $0x80] sm:$0xff] %vm622, %v606
      %640 = vst.msk [vmem:[%s298 + $0x88] sm:$0xff] %vm622, %v607
      %641 = vst.msk [vmem:[%s298 + $0x90] sm:$0xff] %vm622, %v608
      %642 = vst.msk [vmem:[%s298 + $0x98] sm:$0xff] %vm622, %v609
      %643 = vst.msk [vmem:[%s298 + $0xa0] sm:$0xff] %vm622, %v610
      %644 = vst.msk [vmem:[%s298 + $0xa8] sm:$0xff] %vm622, %v611
      %645 = vst.msk [vmem:[%s298 + $0xb0] sm:$0xff] %vm622, %v612
      %646 = vst.msk [vmem:[%s298 + $0xb8] sm:$0xff] %vm622, %v613
      %647 = vst.msk [vmem:[%s298 + $0xc0] sm:$0xff] %vm622, %v614
      %648 = vst.msk [vmem:[%s298 + $0xc8] sm:$0xff] %vm622, %v615
      %649 = vst.msk [vmem:[%s298 + $0xd0] sm:$0xff] %vm622, %v616
      %650 = vst.msk [vmem:[%s298 + $0xd8] sm:$0xff] %vm622, %v617
      %651 = vst.msk [vmem:[%s298 + $0xe0] sm:$0xff] %vm622, %v618
      %652 = vst.msk [vmem:[%s298 + $0xe8] sm:$0xff] %vm622, %v619
      %653 = vst.msk [vmem:[%s298 + $0xf0] sm:$0xff] %vm622, %v620
      %654 = vst.msk [vmem:[%s298 + $0xf8] sm:$0xff] %vm622, %v621
      %s655 = smul.u32 32, %s20
      %p656 = scmp.lt.s32.totalorder %s655, 63
      %s657 = scalar_select %p656, %s655, 63
      %p658 = scmp.lt.s32.totalorder %s21, 0
      %s659 = scalar_select %p658, %s21, 0
      %s660 = sadd.s32 %s659, %s657
      %s661 = smul.addr %s660, 8
      %s662 = scalar_lea.vmem %s4, %s661
      // Predicated region
      $region37: #{tpu_custom_call.1} parent=35 // pred_check
        %p663 = pneg %p162
      $region38: #{tpu_custom_call.1} parent=35 // pred_check_branch
        %665 = sbr.rel (%p663) target = $region40
      $region39: #{tpu_custom_call.1} parent=35 // pred_region
        %s666 = smul.u32 32, %s20
      $region40: #{tpu_custom_call.1} parent=35 // pred_fallthru
        _
    $region36: #{tpu_custom_call.1} parent=5 // pred_fallthru
      _
    %p667 = scmp.le.s32.totalorder 2, %s10
    // Predicated region
    $region41: #{tpu_custom_call.1} parent=5 // pred_check
      %p668 = pneg %p667
    $region42: #{tpu_custom_call.1} parent=5 // pred_check_branch
      %670 = sbr.rel (%p668) target = $region44
    $region43: #{tpu_custom_call.1} parent=5 // pred_region
      %s671 = ssub.s32 %s10, 2
      // Predicated region
      $region45: #{tpu_custom_call.1} parent=43 // pred_check
        %p672 = pneg %p168
      $region46: #{tpu_custom_call.1} parent=43 // pred_check_branch
        %674 = sbr.rel (%p672) target = $region48
      $region47: #{tpu_custom_call.1} parent=43 // pred_region
        %s675 = smul.u32 32, %s23
        %p676 = scmp.lt.s32.totalorder %s675, 63
        %s677 = scalar_select %p676, %s675, 63
        %p678 = scmp.lt.s32.totalorder %s24, 0
        %s679 = scalar_select %p678, %s24, 0
        %s680 = sadd.s32 %s679, %s677
        %s681 = smul.addr %s680, 8
        %s682 = scalar_lea.vmem %s4, %s681
      $region48: #{tpu_custom_call.1} parent=43 // pred_fallthru
        _
    $region44: #{tpu_custom_call.1} parent=5 // pred_fallthru
      _
  $region6: #{tpu_custom_call.1} parent=0 // loop_footer
    %s14 = sadd.s32 1, %s10
  $region7: #{tpu_custom_call.1} parent=0 // loop_footer_branch
    %9 = sbr.rel target = $region3
  $region8: #{tpu_custom_call.1} parent=0 // loop_exit
    _

</llo_original>
